<compile_context>
chip_gen: v7x
topology: tpu7x:2x2x1
jax: 0.10.0
libtpu: 0.0.40
codegen_flags: <defaults>
</compile_context>

<pallas_src>
import math

import jax
import jax.numpy as jnp
from jax.experimental import pallas as pl
from jax.experimental.pallas import tpu as pltpu

_MIB = 1 << 20


def _pick_tile(dim: int, target: int, align: int) -> int:
    """Largest multiple-of-`align` divisor of `dim` that is <= target, else full dim."""
    if dim <= target:
        return dim
    start = (target // align) * align
    for cand in range(start, 0, -align):
        if dim % cand == 0:
            return cand
    return dim


def _choose_tiles(B, L, C_in, C_out, x_itemsize, w_itemsize, sub,
                  tl_target, tci_target, tco_target, vmem_budget):
    """Pick (TL, TCI, TCO, hb) respecting the (8,128) rule and a VMEM budget."""

    def w_foot(tci, tco):
        return 2 * 3 * tci * tco * w_itemsize          # double-buffered weight block

    # ---- channel tiles: prefer the whole weight resident in VMEM ----
    TCI, TCO = C_in, C_out
    if (w_foot(TCI, TCO) > vmem_budget // 2
            or C_in > tci_target or C_out > tco_target):
        TCI = _pick_tile(C_in, tci_target, 128)
        TCO = _pick_tile(C_out, tco_target, 128)
        while w_foot(TCI, TCO) > vmem_budget // 2:
            if TCO >= TCI and TCO > 128:
                new = _pick_tile(C_out, TCO // 2, 128)
                if new >= TCO:
                    break
                TCO = new
            elif TCI > 128:
                new = _pick_tile(C_in, TCI // 2, 128)
                if new >= TCI:
                    break
                TCI = new
            else:
                break
    n_ci, n_co = C_in // TCI, C_out // TCO

    # ---- sequence tile ----
    tl_t = tl_target
    if B == 1 and n_co == 1 and L >= 2 * sub:
        # keep >=2 iterations on a parallel axis (v7x 2 TCs / megacore sharding)
        tl_t = min(tl_t, max(sub, L // 2))
    TL = _pick_tile(L, min(tl_t, L), sub)

    def hb_of(tl):
        # halo strip height: one sublane-aligned block (never the full sequence)
        return sub if (L % sub == 0 and tl % sub == 0) else tl

    def footprint(tl):
        hb = hb_of(tl)
        f = 2 * tl * TCI * x_itemsize          # x tile (double buffered)
        f += 2 * 2 * hb * TCI * x_itemsize     # prev/next halo strips
        f += w_foot(TCI, TCO)                  # weight
        f += 2 * 8 * TCO * w_itemsize          # bias row (padded to 8 sublanes)
        f += 2 * tl * TCO * x_itemsize         # output tile
        if n_ci > 1:
            f += tl * TCO * 4                  # f32 accumulator scratch
        return f

    while footprint(TL) > vmem_budget and TL > sub:
        new = _pick_tile(L, TL // 2, sub)
        if new >= TL:
            break
        TL = new

    return TL, TCI, TCO, hb_of(TL), footprint(TL)


def _build_kernel(TL, hb, single_ci):
    def kernel(x_ref, prev_ref, next_ref, w_ref, b_ref, o_ref, *acc):
        lt = pl.program_id(1)
        n_lt = pl.num_programs(1)

        x_t = x_ref[0]                                   # (TL, TCI)

        # Single-row halos; Conv1d zero padding at the sequence boundaries.
        prev_row = prev_ref[0][hb - 1:hb, :]             # element row lt*TL - 1
        next_row = next_ref[0][0:1, :]                   # element row (lt+1)*TL
        prev_row = jnp.where(lt == 0, jnp.zeros_like(prev_row), prev_row)
        next_row = jnp.where(lt == n_lt - 1, jnp.zeros_like(next_row), next_row)

        # Shifted operands via XLU roll (overlaps MXU); patch the one boundary
        # row with a VALU select instead of a retiling concatenate copy.
        row = jax.lax.broadcasted_iota(jnp.int32, x_t.shape, 0)
        x_m1 = jnp.where(row == 0, prev_row, pltpu.roll(x_t, 1, 0))       # x[l-1]
        x_p1 = jnp.where(row == TL - 1, next_row, pltpu.roll(x_t, TL - 1, 0))  # x[l+1]

        part = (jnp.dot(x_m1, w_ref[0], preferred_element_type=jnp.float32)
                + jnp.dot(x_t, w_ref[1], preferred_element_type=jnp.float32)
                + jnp.dot(x_p1, w_ref[2], preferred_element_type=jnp.float32))

        if single_ci:
            o_ref[0] = (part + b_ref[...].astype(jnp.float32)).astype(o_ref.dtype)
        else:
            acc_ref = acc[0]
            ci = pl.program_id(3)
            n_ci = pl.num_programs(3)

            @pl.when(ci == 0)
            def _init():
                acc_ref[...] = part

            @pl.when(ci > 0)
            def _accum():
                acc_ref[...] += part

            @pl.when(ci == n_ci - 1)
            def _finalize():
                o_ref[0] = (acc_ref[...]
                            + b_ref[...].astype(jnp.float32)).astype(o_ref.dtype)

    return kernel


def conv_mlp_pallas(x: jax.Array, w_t: jax.Array, bias: jax.Array, *,
                    tl_target: int = 512, tci_target: int = 1024,
                    tco_target: int = 1024,
                    vmem_budget_bytes: int = 36 * _MIB,
                    matmul_dtype=None) -> jax.Array:
    """Fused Transpose -> Conv1d(k=3, pad=1) -> Transpose.

    x:    (B, L, C_in)       activations (batch, seq, hidden)
    w_t:  (3, C_in, C_out)   pre-transposed Conv1d weight (tap, in, out)
    bias: (C_out,)
    returns (B, L, C_out)
    """
    B, L, C_in = x.shape
    three, c_in_w, C_out = w_t.shape
    assert three == 3 and c_in_w == C_in, (w_t.shape, x.shape)

    out_dtype = x.dtype
    if matmul_dtype is not None:
        x = x.astype(matmul_dtype)
        w_t = w_t.astype(matmul_dtype)
    b_row = jnp.asarray(bias, jnp.float32).reshape(1, C_out)

    x_itemsize = jnp.dtype(x.dtype).itemsize
    w_itemsize = jnp.dtype(w_t.dtype).itemsize
    sub = {4: 8, 2: 16, 1: 32}.get(x_itemsize, 8)

    TL, TCI, TCO, hb, footprint = _choose_tiles(
        B, L, C_in, C_out, x_itemsize, w_itemsize, sub,
        tl_target, tci_target, tco_target, vmem_budget_bytes)

    n_lt, n_ci, n_co = L // TL, C_in // TCI, C_out // TCO
    lpb = TL // hb            # seq-tile length in halo-block units
    n_hb = L // hb            # number of halo blocks along L
    single_ci = (n_ci == 1)

    grid = (B, n_lt, n_co, n_ci)     # C_in reduction innermost ("arbitrary")

    in_specs = [
        pl.BlockSpec((1, TL, TCI), lambda b, l, co, ci: (b, l, ci)),
        pl.BlockSpec((1, hb, TCI),
                     lambda b, l, co, ci: (b, jnp.maximum(l * lpb - 1, 0), ci)),
        pl.BlockSpec((1, hb, TCI),
                     lambda b, l, co, ci: (b, jnp.minimum((l + 1) * lpb, n_hb - 1), ci)),
        pl.BlockSpec((3, TCI, TCO), lambda b, l, co, ci: (0, ci, co)),
        pl.BlockSpec((1, TCO), lambda b, l, co, ci: (0, co)),
    ]
    out_spec = pl.BlockSpec((1, TL, TCO), lambda b, l, co, ci: (b, l, co))

    scratch_shapes = [] if single_ci else [pltpu.VMEM((TL, TCO), jnp.float32)]

    # Cost estimate reflecting the bytes actually streamed under this grid.
    x_fetches = B * n_lt * (n_co * n_ci if n_ci > 1 else 1)
    w_fetches = 1 if (n_ci == 1 and n_co == 1) else B * n_lt * n_co * n_ci
    bytes_accessed = int(
        x_fetches * (TL + 2 * hb) * TCI * x_itemsize
        + w_fetches * 3 * TCI * TCO * w_itemsize
        + C_out * 4
        + B * L * C_out * jnp.dtype(out_dtype).itemsize)
    cost = pl.CostEstimate(flops=2 * 3 * B * L * C_in * C_out,
                           transcendentals=0,
                           bytes_accessed=bytes_accessed)

    # Raise the scoped-VMEM limit to match the chosen tiling, but stay well below
    # v7x's 64 MiB physical VMEM.
    vmem_limit = int(min(56 * _MIB, max(16 * _MIB, footprint * 3 // 2 + 2 * _MIB)))

    return pl.pallas_call(
        _build_kernel(TL, hb, single_ci),
        out_shape=jax.ShapeDtypeStruct((B, L, C_out), out_dtype),
        grid_spec=pltpu.PrefetchScalarGridSpec(
            num_scalar_prefetch=0,
            grid=grid,
            in_specs=in_specs,
            out_specs=out_spec,
            scratch_shapes=scratch_shapes,
        ),
        compiler_params=pltpu.CompilerParams(
            dimension_semantics=("parallel", "parallel", "parallel", "arbitrary"),
            vmem_limit_bytes=vmem_limit,
        ),
        cost_estimate=cost,
    )(x, x, x, w_t, b_row)


def conv_mlp_reference(x, weight, bias):
    """Pure-JAX reference: Transpose -> Conv1d(k=3, pad=1) -> Transpose."""
    B, L, _ = x.shape
    xp = jnp.pad(x.astype(jnp.float32), ((0, 0), (1, 1), (0, 0)))
    out = jnp.zeros((B, L, weight.shape[0]), jnp.float32)
    for k in range(3):
        out = out + jnp.einsum("blc,oc->blo", xp[:, k:k + L, :],
                               weight[:, :, k].astype(jnp.float32))
    return (out + bias.astype(jnp.float32)[None, None, :]).astype(x.dtype)


class Conv_MLP:
    """JAX/Pallas mirror of the PyTorch `Conv_MLP` module (transposes fused into the conv)."""

    def __init__(self, in_dim: int, out_dim: int, *, key=None, dtype=jnp.float32):
        if key is None:
            key = jax.random.PRNGKey(0)
        kw, kb = jax.random.split(key)
        bound = 1.0 / math.sqrt(in_dim * 3)   # PyTorch Conv1d default init
        self.weight = jax.random.uniform(kw, (out_dim, in_dim, 3), dtype,
                                         minval=-bound, maxval=bound)
        self.bias = jax.random.uniform(kb, (out_dim,), dtype,
                                       minval=-bound, maxval=bound)
        # Hoisted parameter-layout plumbing: done once at init, not per forward.
        self.w_t = jnp.transpose(self.weight, (2, 1, 0))   # (3, C_in, C_out)

    def __call__(self, x):
        return conv_mlp_pallas(x, self.w_t, self.bias)


if __name__ == "__main__":
    # Small shapes consistent with the module: x = (batch, seq, hidden).
    B, L, C_in, C_out = 2, 8, 32, 64
    x = jax.random.normal(jax.random.PRNGKey(0), (B, L, C_in), dtype=jnp.float32)

    module = Conv_MLP(C_in, C_out, key=jax.random.PRNGKey(0))
    y = jax.block_until_ready(module(x))

    assert y.shape == (B, L, C_out), y.shape
    assert y.dtype == x.dtype

    ref = conv_mlp_reference(x, module.weight, module.bias)
    err = float(jnp.max(jnp.abs(y - ref)))
    assert bool(jnp.allclose(y, ref, atol=2e-3, rtol=2e-3)), f"max abs err {err}"

    # Also exercise the fully tiled path: seq halos + C_in reduction + C_out tiles.
    k1, k2, k3 = jax.random.split(jax.random.PRNGKey(1), 3)
    B2, L2, Ci2, Co2 = 2, 32, 256, 256
    x2 = jax.random.normal(k1, (B2, L2, Ci2), dtype=jnp.float32)
    w2 = jax.random.uniform(k2, (Co2, Ci2, 3), jnp.float32, minval=-0.05, maxval=0.05)
    b2 = jax.random.uniform(k3, (Co2,), jnp.float32, minval=-0.05, maxval=0.05)
    w2_t = jnp.transpose(w2, (2, 1, 0))
    y2 = jax.block_until_ready(
        conv_mlp_pallas(x2, w2_t, b2, tl_target=16, tci_target=128, tco_target=128))
    ref2 = conv_mlp_reference(x2, w2, b2)
    err2 = float(jnp.max(jnp.abs(y2 - ref2)))
    assert bool(jnp.allclose(y2, ref2, atol=2e-3, rtol=2e-3)), f"max abs err {err2}"

    print("KERNEL_OK")
</pallas_src>

<mosaic_0001>
module attributes {stable_mosaic.version = 11 : i64} {
  func.func @kernel(%arg0: i32, %arg1: i32, %arg2: i32, %arg3: i32, %arg4: memref<1x8x32xf32, #tpu.memory_space<vmem>>, %arg5: memref<1x8x32xf32, #tpu.memory_space<vmem>>, %arg6: memref<1x8x32xf32, #tpu.memory_space<vmem>>, %arg7: memref<3x32x64xf32, #tpu.memory_space<vmem>>, %arg8: memref<1x64xf32, #tpu.memory_space<vmem>>, %arg9: memref<1x8x64xf32, #tpu.memory_space<vmem>>) attributes {dimension_semantics = [#tpu.dimension_semantics<parallel>, #tpu.dimension_semantics<parallel>, #tpu.dimension_semantics<parallel>, #tpu.dimension_semantics<arbitrary>], iteration_bounds = array<i64: 2, 1, 1, 1>, scalar_prefetch = 0 : i64, scratch_operands = 0 : i64, tpu.core_type = #tpu.core_type<tc>, window_params = [{transform_indices = @transform_0, window_bounds = array<i64: 1, 8, 32>}, {transform_indices = @transform_1, window_bounds = array<i64: 1, 8, 32>}, {transform_indices = @transform_2, window_bounds = array<i64: 1, 8, 32>}, {transform_indices = @transform_3, window_bounds = array<i64: 3, 32, 64>}, {transform_indices = @transform_4, window_bounds = array<i64: 1, 64>}, {transform_indices = @transform_5, window_bounds = array<i64: 1, 8, 64>}]} {
    %c0 = arith.constant 0 : index
    %c0_0 = arith.constant 0 : index
    %c0_1 = arith.constant 0 : index
    %0 = vector.load %arg4[%c0, %c0_0, %c0_1] : memref<1x8x32xf32, #tpu.memory_space<vmem>>, vector<1x8x32xf32>
    %1 = vector.shape_cast %0 : vector<1x8x32xf32> to vector<8x32xf32>
    %c0_2 = arith.constant 0 : index
    %c0_3 = arith.constant 0 : index
    %c0_4 = arith.constant 0 : index
    %2 = vector.load %arg5[%c0_2, %c0_3, %c0_4] : memref<1x8x32xf32, #tpu.memory_space<vmem>>, vector<1x8x32xf32>
    %3 = vector.shape_cast %2 : vector<1x8x32xf32> to vector<8x32xf32>
    %4 = vector.extract_strided_slice %3 {offsets = [7, 0], sizes = [1, 32], strides = [1, 1]} : vector<8x32xf32> to vector<1x32xf32>
    %c0_5 = arith.constant 0 : index
    %c0_6 = arith.constant 0 : index
    %c0_7 = arith.constant 0 : index
    %5 = vector.load %arg6[%c0_5, %c0_6, %c0_7] : memref<1x8x32xf32, #tpu.memory_space<vmem>>, vector<1x8x32xf32>
    %6 = vector.shape_cast %5 : vector<1x8x32xf32> to vector<8x32xf32>
    %7 = vector.extract_strided_slice %6 {offsets = [0, 0], sizes = [1, 32], strides = [1, 1]} : vector<8x32xf32> to vector<1x32xf32>
    %c0_i32 = arith.constant 0 : i32
    %8 = arith.cmpi eq, %arg1, %c0_i32 : i32
    %cst = arith.constant 0.000000e+00 : f32
    %9 = vector.broadcast %cst : f32 to vector<1x32xf32>
    %10 = arith.select %8, %9, %4 : vector<1x32xf32>
    %c0_i32_8 = arith.constant 0 : i32
    %11 = arith.cmpi eq, %arg1, %c0_i32_8 : i32
    %cst_9 = arith.constant 0.000000e+00 : f32
    %12 = vector.broadcast %cst_9 : f32 to vector<1x32xf32>
    %13 = arith.select %11, %12, %7 : vector<1x32xf32>
    %14 = tpu.iota {dimensions = array<i32: 0>} : vector<8x32xi32>
    %c0_i32_10 = arith.constant 0 : i32
    %15 = vector.broadcast %c0_i32_10 : i32 to vector<8x32xi32>
    %16 = arith.cmpi eq, %14, %15 : vector<8x32xi32>
    %c1_i32 = arith.constant 1 : i32
    %17 = tpu.dynamic_rotate %1 by %c1_i32 dim 0 : vector<8x32xf32>, i32 -> vector<8x32xf32>
    %18 = vector.shape_cast %10 : vector<1x32xf32> to vector<1x32xf32>
    %19 = vector.broadcast %18 : vector<1x32xf32> to vector<8x32xf32>
    %20 = arith.select %16, %19, %17 : vector<8x32xi1>, vector<8x32xf32>
    %c7_i32 = arith.constant 7 : i32
    %21 = vector.broadcast %c7_i32 : i32 to vector<8x32xi32>
    %22 = arith.cmpi eq, %14, %21 : vector<8x32xi32>
    %c7_i32_11 = arith.constant 7 : i32
    %23 = tpu.dynamic_rotate %1 by %c7_i32_11 dim 0 : vector<8x32xf32>, i32 -> vector<8x32xf32>
    %24 = vector.shape_cast %13 : vector<1x32xf32> to vector<1x32xf32>
    %25 = vector.broadcast %24 : vector<1x32xf32> to vector<8x32xf32>
    %26 = arith.select %22, %25, %23 : vector<8x32xi1>, vector<8x32xf32>
    %c0_12 = arith.constant 0 : index
    %c0_13 = arith.constant 0 : index
    %c0_14 = arith.constant 0 : index
    %27 = vector.load %arg7[%c0_12, %c0_13, %c0_14] : memref<3x32x64xf32, #tpu.memory_space<vmem>>, vector<1x32x64xf32>
    %28 = vector.shape_cast %27 : vector<1x32x64xf32> to vector<32x64xf32>
    %cst_15 = arith.constant dense<0.000000e+00> : vector<8x64xf32>
    %29 = tpu.matmul %20, %28, %cst_15 {dimension_numbers = #tpu.dot_dimension_numbers<[1], [0], [0], [1], [0, 0, 1, 1], [], []>} : vector<8x32xf32>, vector<32x64xf32>, vector<8x64xf32> -> vector<8x64xf32>
    %c1 = arith.constant 1 : index
    %c0_16 = arith.constant 0 : index
    %c0_17 = arith.constant 0 : index
    %30 = vector.load %arg7[%c1, %c0_16, %c0_17] : memref<3x32x64xf32, #tpu.memory_space<vmem>>, vector<1x32x64xf32>
    %31 = vector.shape_cast %30 : vector<1x32x64xf32> to vector<32x64xf32>
    %cst_18 = arith.constant dense<0.000000e+00> : vector<8x64xf32>
    %32 = tpu.matmul %1, %31, %cst_18 {dimension_numbers = #tpu.dot_dimension_numbers<[1], [0], [0], [1], [0, 0, 1, 1], [], []>} : vector<8x32xf32>, vector<32x64xf32>, vector<8x64xf32> -> vector<8x64xf32>
    %33 = arith.addf %29, %32 : vector<8x64xf32>
    %c2 = arith.constant 2 : index
    %c0_19 = arith.constant 0 : index
    %c0_20 = arith.constant 0 : index
    %34 = vector.load %arg7[%c2, %c0_19, %c0_20] : memref<3x32x64xf32, #tpu.memory_space<vmem>>, vector<1x32x64xf32>
    %35 = vector.shape_cast %34 : vector<1x32x64xf32> to vector<32x64xf32>
    %cst_21 = arith.constant dense<0.000000e+00> : vector<8x64xf32>
    %36 = tpu.matmul %26, %35, %cst_21 {dimension_numbers = #tpu.dot_dimension_numbers<[1], [0], [0], [1], [0, 0, 1, 1], [], []>} : vector<8x32xf32>, vector<32x64xf32>, vector<8x64xf32> -> vector<8x64xf32>
    %37 = arith.addf %33, %36 : vector<8x64xf32>
    %c0_22 = arith.constant 0 : index
    %c0_23 = arith.constant 0 : index
    %38 = vector.load %arg8[%c0_22, %c0_23] : memref<1x64xf32, #tpu.memory_space<vmem>>, vector<1x64xf32>
    %39 = vector.broadcast %38 : vector<1x64xf32> to vector<8x64xf32>
    %40 = arith.addf %37, %39 : vector<8x64xf32>
    %c0_24 = arith.constant 0 : index
    %c0_25 = arith.constant 0 : index
    %c0_26 = arith.constant 0 : index
    %41 = vector.load %arg9[%c0_24, %c0_25, %c0_26] : memref<1x8x64xf32, #tpu.memory_space<vmem>>, vector<1x8x64xf32>
    %42 = vector.shape_cast %41 : vector<1x8x64xf32> to vector<8x64xf32>
    %43 = vector.shape_cast %40 : vector<8x64xf32> to vector<1x8x64xf32>
    tpu.vector_store %arg9[%c0_24, %c0_25, %c0_26], %43 {strides = array<i32>} : memref<1x8x64xf32, #tpu.memory_space<vmem>>, vector<1x8x64xf32>,
    return
  }
  func.func @transform_0(%arg0: i32, %arg1: i32, %arg2: i32, %arg3: i32) -> (i32, i32, i32) {
    %c0_i32 = arith.constant 0 : i32
    return %arg0, %arg1, %arg3 : i32, i32, i32
  }
  func.func @transform_1(%arg0: i32, %arg1: i32, %arg2: i32, %arg3: i32) -> (i32, i32, i32) {
    %c1_i32 = arith.constant 1 : i32
    %0 = arith.muli %arg1, %c1_i32 : i32
    %c1_i32_0 = arith.constant 1 : i32
    %1 = arith.subi %0, %c1_i32_0 : i32
    %c0_i32 = arith.constant 0 : i32
    %2 = arith.maxsi %1, %c0_i32 : i32
    %c0_i32_1 = arith.constant 0 : i32
    return %arg0, %2, %arg3 : i32, i32, i32
  }
  func.func @transform_2(%arg0: i32, %arg1: i32, %arg2: i32, %arg3: i32) -> (i32, i32, i32) {
    %c1_i32 = arith.constant 1 : i32
    %0 = arith.addi %arg1, %c1_i32 : i32
    %c1_i32_0 = arith.constant 1 : i32
    %1 = arith.muli %0, %c1_i32_0 : i32
    %c0_i32 = arith.constant 0 : i32
    %2 = arith.minsi %1, %c0_i32 : i32
    %c0_i32_1 = arith.constant 0 : i32
    return %arg0, %2, %arg3 : i32, i32, i32
  }
  func.func @transform_3(%arg0: i32, %arg1: i32, %arg2: i32, %arg3: i32) -> (i32, i32, i32) {
    %c0_i32 = arith.constant 0 : i32
    %c0_i32_0 = arith.constant 0 : i32
    return %c0_i32, %arg3, %arg2 : i32, i32, i32
  }
  func.func @transform_4(%arg0: i32, %arg1: i32, %arg2: i32, %arg3: i32) -> (i32, i32) {
    %c0_i32 = arith.constant 0 : i32
    %c0_i32_0 = arith.constant 0 : i32
    return %c0_i32, %arg2 : i32, i32
  }
  func.func @transform_5(%arg0: i32, %arg1: i32, %arg2: i32, %arg3: i32) -> (i32, i32, i32) {
    %c0_i32 = arith.constant 0 : i32
    return %arg0, %arg1, %arg2 : i32, i32, i32
  }
}

</mosaic_0001>

<llo_original>
// kernel: tpu_custom_call.1
$region0: #{tpu_custom_call.1}
  #allocation0 [shape = 'u32[]', space=smem, size = 0x4, offset = 0x4, fixed_abs, tag = 'smem constant byte address 0x4 - core index']
  #allocation1 [shape = 'u32[144,128]{1,0:T(1,128)}', space=vmem, size = 0x12000, scoped, tag = 'internal scratch']
  %s0 = inlined_call_operand.hbm [shape: f32[2,8,32], index: 0, kind: input, shape index: {}]
  %s1 = inlined_call_operand.hbm [shape: f32[2,8,32], index: 1, kind: input, shape index: {}]
  %s2 = inlined_call_operand.hbm [shape: f32[2,8,32], index: 2, kind: input, shape index: {}]
  %s3 = inlined_call_operand.hbm [shape: f32[3,32,64], index: 3, kind: input, shape index: {}]
  %s4 = inlined_call_operand.vmem [shape: f32[1,64], index: 4, kind: input, shape index: {}]
  %s5 = inlined_call_operand.hbm [shape: f32[2,8,64], index: 5, kind: output, shape index: {}]
  %s6 = sld [smem:[#allocation0]]
  $region69: #{tpu_custom_call.1} parent=0
    _
  %s8 = ssub.s32 1, %s6
  %s9 = scalar_select 0, %s8, %s6
  $region1: #{tpu_custom_call.1} parent=0
    #allocation2 [shape = 'u8[8192]{0}', space=vmem, size = 0x2000, scoped, tag = 'input window, operand 0']
    #allocation3 [shape = 's32[2]{0}', space=sflag, size = 0x8, scoped, tag = 'scoped memory for tpu_custom_call.1']
    #allocation4 [shape = 's32[2]{0}', space=sflag, size = 0x8, scoped, tag = 'scoped memory for tpu_custom_call.1']
    #allocation5 [shape = 'u8[8192]{0}', space=vmem, size = 0x2000, scoped, tag = 'input window, operand 1']
    #allocation6 [shape = 's32[2]{0}', space=sflag, size = 0x8, scoped, tag = 'scoped memory for tpu_custom_call.1']
    #allocation7 [shape = 'u8[8192]{0}', space=vmem, size = 0x2000, scoped, tag = 'input window, operand 2']
    #allocation8 [shape = 'u8[49152]{0}', space=vmem, size = 0xc000, scoped, tag = 'input window, operand 3, single buffered']
    #allocation9 [shape = 's32[1]{0}', space=sflag, size = 0x4, scoped, tag = 'scoped memory for tpu_custom_call.1']
    #allocation10 [shape = 'u8[8192]{0}', space=vmem, size = 0x2000, scoped, tag = 'output window, operand 0']
    %10 = vsyncpa [#allocation3], 0
    %s11 = scalar_lea.sflag [#allocation3], 1
    %12 = vsyncpa %s11, 0
    %13 = vsyncpa [#allocation6], 0
    %s14 = scalar_lea.sflag [#allocation6], 1
    %15 = vsyncpa %s14, 0
    %16 = vsyncpa [#allocation9], 0
    %17 = vsyncpa [#allocation4], 0
    %s18 = scalar_lea.sflag [#allocation4], 1
    %19 = vsyncpa %s18, 0
    loop: start=0, step=1, limit=4
    $region2: #{tpu_custom_call.1} parent=1 // loop_pre_header
      _
    $region3: #{tpu_custom_call.1} parent=1 // loop_header
      %s21 = sphi 0, %s25
      %p22 = scmp.ge.s32.totalorder %s21, 4
      %s28 = sphi 0, %s54
      %s29 = sphi 0, %s50
      %s30 = sphi 0, %s46
      %s31 = sphi 0, %s42
      %s32 = sphi 0, %s28
      %s33 = sphi 0, %s29
      %s34 = sphi 0, %s30
      %s35 = sphi 0, %s31
      %s36 = sphi 0, %s32
      %s37 = sphi 0, %s33
      %s38 = sphi 0, %s34
      %s39 = sphi 0, %s35
      %s61 = sphi 0, %s63
      %s64 = sphi 0, %s61
      %s65 = sphi 0, %s64
      %s81 = sphi 0, %s65
      %s97 = sphi 0, %s99
      %s100 = sphi 0, %s97
      %s101 = sphi 0, %s100
      %s117 = sphi 0, %s101
      %s133 = sphi 0, %s135
      %s136 = sphi 0, %s133
      %s137 = sphi 0, %s136
      %s153 = sphi 0, %s137
      %s161 = sphi 0, %s163
      %s164 = sphi 0, %s161
      %s165 = sphi 0, %s164
      %s181 = sphi 0, %s165
      %s187 = sphi 0, %s189
      %s190 = sphi 0, %s187
      %s191 = sphi 0, %s190
      %s207 = sphi 0, %s191
      %s217 = sphi 0, %s219
      %s220 = sphi 0, %s217
      %s221 = sphi 0, %s220
      %s237 = sphi 0, %s221
    $region4: #{tpu_custom_call.1} parent=1 // loop_header_branch
      %24 = sbr.rel (%p22) target = $region8
    $region5: #{tpu_custom_call.1} parent=1 // loop_body
      %s26 = ssub.s32 %s21, 1
      %s27 = ssub.s32 %s21, 2
      %s40 = sadd.s32 1, %s31
      %p41 = scmp.ge.s32.totalorder %s40, 1
      %s42 = scalar_select %p41, 0, %s40
      %s43 = sadd.s32 1, %s30
      %s44 = scalar_select %p41, %s43, %s30
      %p45 = scmp.ge.s32.totalorder %s44, 1
      %s46 = scalar_select %p45, 0, %s44
      %s47 = sadd.s32 1, %s29
      %s48 = scalar_select %p45, %s47, %s29
      %p49 = scmp.ge.s32.totalorder %s48, 1
      %s50 = scalar_select %p49, 0, %s48
      %s51 = sadd.s32 1, %s28
      %s52 = scalar_select %p49, %s51, %s28
      %p53 = scmp.ge.s32.totalorder %s52, 2
      %s54 = scalar_select %p53, 0, %s52
      %s55 = ssub.s32 %s28, %s54
      %s56 = ssub.s32 %s29, %s50
      %s57 = sor.u32 %s55, %s56
      %s58 = ssub.s32 %s31, %s42
      %s59 = sor.u32 %s57, %s58
      %p60 = scmp.eq.s32.totalorder %s59, 0
      %s62 = sadd.s32 %s61, 1
      %s63 = scalar_select %p60, %s61, %s62
      %p66 = pneg %p60
      %p67 = scmp.eq.s32.totalorder %s21, 1
      %p68 = por %p66, %p67
      %p69 = scmp.ne.s32.totalorder %s61, %s64
      %p70 = scmp.eq.s32.totalorder %s21, 0
      %p71 = por %p69, %p70
      %p72 = scmp.ne.s32.totalorder %s61, %s64
      %p73 = scmp.eq.s32.totalorder %s26, 1
      %p74 = por %p72, %p73
      %p75 = scmp.ne.s32.totalorder %s64, %s65
      %p76 = scmp.eq.s32.totalorder %s26, 0
      %p77 = por %p75, %p76
      %p78 = scmp.ne.s32.totalorder %s64, %s65
      %p79 = scmp.eq.s32.totalorder %s27, 1
      %p80 = por %p78, %p79
      %p82 = scmp.ne.s32.totalorder %s65, %s81
      %p83 = scmp.eq.s32.totalorder %s27, 0
      %p84 = por %p82, %p83
      %s85 = ssub.s32 %s29, 1
      %p86 = scmp.gt.s32.totalorder %s85, 0
      %s87 = scalar_select %p86, %s85, 0
      %s88 = ssub.s32 %s50, 1
      %p89 = scmp.gt.s32.totalorder %s88, 0
      %s90 = scalar_select %p89, %s88, 0
      %s91 = ssub.s32 %s28, %s54
      %s92 = ssub.s32 %s87, %s90
      %s93 = sor.u32 %s91, %s92
      %s94 = ssub.s32 %s31, %s42
      %s95 = sor.u32 %s93, %s94
      %p96 = scmp.eq.s32.totalorder %s95, 0
      %s98 = sadd.s32 %s97, 1
      %s99 = scalar_select %p96, %s97, %s98
      %p102 = pneg %p96
      %p103 = scmp.eq.s32.totalorder %s21, 1
      %p104 = por %p102, %p103
      %p105 = scmp.ne.s32.totalorder %s97, %s100
      %p106 = scmp.eq.s32.totalorder %s21, 0
      %p107 = por %p105, %p106
      %p108 = scmp.ne.s32.totalorder %s97, %s100
      %p109 = scmp.eq.s32.totalorder %s26, 1
      %p110 = por %p108, %p109
      %p111 = scmp.ne.s32.totalorder %s100, %s101
      %p112 = scmp.eq.s32.totalorder %s26, 0
      %p113 = por %p111, %p112
      %p114 = scmp.ne.s32.totalorder %s100, %s101
      %p115 = scmp.eq.s32.totalorder %s27, 1
      %p116 = por %p114, %p115
      %p118 = scmp.ne.s32.totalorder %s101, %s117
      %p119 = scmp.eq.s32.totalorder %s27, 0
      %p120 = por %p118, %p119
      %s121 = sadd.s32 %s29, 1
      %p122 = scmp.lt.s32.totalorder %s121, 0
      %s123 = scalar_select %p122, %s121, 0
      %s124 = sadd.s32 %s50, 1
      %p125 = scmp.lt.s32.totalorder %s124, 0
      %s126 = scalar_select %p125, %s124, 0
      %s127 = ssub.s32 %s28, %s54
      %s128 = ssub.s32 %s123, %s126
      %s129 = sor.u32 %s127, %s128
      %s130 = ssub.s32 %s31, %s42
      %s131 = sor.u32 %s129, %s130
      %p132 = scmp.eq.s32.totalorder %s131, 0
      %s134 = sadd.s32 %s133, 1
      %s135 = scalar_select %p132, %s133, %s134
      %p138 = pneg %p132
      %p139 = scmp.eq.s32.totalorder %s21, 1
      %p140 = por %p138, %p139
      %p141 = scmp.ne.s32.totalorder %s133, %s136
      %p142 = scmp.eq.s32.totalorder %s21, 0
      %p143 = por %p141, %p142
      %p144 = scmp.ne.s32.totalorder %s133, %s136
      %p145 = scmp.eq.s32.totalorder %s26, 1
      %p146 = por %p144, %p145
      %p147 = scmp.ne.s32.totalorder %s136, %s137
      %p148 = scmp.eq.s32.totalorder %s26, 0
      %p149 = por %p147, %p148
      %p150 = scmp.ne.s32.totalorder %s136, %s137
      %p151 = scmp.eq.s32.totalorder %s27, 1
      %p152 = por %p150, %p151
      %p154 = scmp.ne.s32.totalorder %s137, %s153
      %p155 = scmp.eq.s32.totalorder %s27, 0
      %p156 = por %p154, %p155
      %s157 = ssub.s32 %s31, %s42
      %s158 = ssub.s32 %s30, %s46
      %s159 = sor.u32 %s157, %s158
      %p160 = scmp.eq.s32.totalorder %s159, 0
      %s162 = sadd.s32 %s161, 1
      %s163 = scalar_select %p160, %s161, %s162
      %p166 = pneg %p160
      %p167 = scmp.eq.s32.totalorder %s21, 1
      %p168 = por %p166, %p167
      %p169 = scmp.ne.s32.totalorder %s161, %s164
      %p170 = scmp.eq.s32.totalorder %s21, 0
      %p171 = por %p169, %p170
      %p172 = scmp.ne.s32.totalorder %s161, %s164
      %p173 = scmp.eq.s32.totalorder %s26, 1
      %p174 = por %p172, %p173
      %p175 = scmp.ne.s32.totalorder %s164, %s165
      %p176 = scmp.eq.s32.totalorder %s26, 0
      %p177 = por %p175, %p176
      %p178 = scmp.ne.s32.totalorder %s164, %s165
      %p179 = scmp.eq.s32.totalorder %s27, 1
      %p180 = por %p178, %p179
      %p182 = scmp.ne.s32.totalorder %s165, %s181
      %p183 = scmp.eq.s32.totalorder %s27, 0
      %p184 = por %p182, %p183
      %s185 = ssub.s32 %s30, %s46
      %p186 = scmp.eq.s32.totalorder %s185, 0
      %s188 = sadd.s32 %s187, 1
      %s189 = scalar_select %p186, %s187, %s188
      %p192 = pneg %p186
      %p193 = scmp.eq.s32.totalorder %s21, 1
      %p194 = por %p192, %p193
      %p195 = scmp.ne.s32.totalorder %s187, %s190
      %p196 = scmp.eq.s32.totalorder %s21, 0
      %p197 = por %p195, %p196
      %p198 = scmp.ne.s32.totalorder %s187, %s190
      %p199 = scmp.eq.s32.totalorder %s26, 1
      %p200 = por %p198, %p199
      %p201 = scmp.ne.s32.totalorder %s190, %s191
      %p202 = scmp.eq.s32.totalorder %s26, 0
      %p203 = por %p201, %p202
      %p204 = scmp.ne.s32.totalorder %s190, %s191
      %p205 = scmp.eq.s32.totalorder %s27, 1
      %p206 = por %p204, %p205
      %p208 = scmp.ne.s32.totalorder %s191, %s207
      %p209 = scmp.eq.s32.totalorder %s27, 0
      %p210 = por %p208, %p209
      %s211 = ssub.s32 %s28, %s54
      %s212 = ssub.s32 %s29, %s50
      %s213 = sor.u32 %s211, %s212
      %s214 = ssub.s32 %s30, %s46
      %s215 = sor.u32 %s213, %s214
      %p216 = scmp.eq.s32.totalorder %s215, 0
      %s218 = sadd.s32 %s217, 1
      %s219 = scalar_select %p216, %s217, %s218
      %p222 = pneg %p216
      %p223 = scmp.eq.s32.totalorder %s21, 1
      %p224 = por %p222, %p223
      %p225 = scmp.ne.s32.totalorder %s217, %s220
      %p226 = scmp.eq.s32.totalorder %s21, 0
      %p227 = por %p225, %p226
      %p228 = scmp.ne.s32.totalorder %s217, %s220
      %p229 = scmp.eq.s32.totalorder %s26, 1
      %p230 = por %p228, %p229
      %p231 = scmp.ne.s32.totalorder %s220, %s221
      %p232 = scmp.eq.s32.totalorder %s26, 0
      %p233 = por %p231, %p232
      %p234 = scmp.ne.s32.totalorder %s220, %s221
      %p235 = scmp.eq.s32.totalorder %s27, 1
      %p236 = por %p234, %p235
      %p238 = scmp.ne.s32.totalorder %s221, %s237
      %p239 = scmp.eq.s32.totalorder %s27, 0
      %p240 = por %p238, %p239
      %p241 = scmp.le.s32.totalorder 1, %s21
      %p242 = scmp.lt.s32.totalorder %s21, 3
      %p243 = pnand %p241, %p242
      %p244 = pneg %p243
      // Predicated region
      $region9: #{tpu_custom_call.1} parent=5 // pred_check
        _
      $region10: #{tpu_custom_call.1} parent=5 // pred_check_branch
        %246 = sbr.rel (%p243) target = $region12
      $region11: #{tpu_custom_call.1} parent=5 // pred_region
        %s247 = ssub.s32 %s21, 1
        // Predicated region
        $region13: #{tpu_custom_call.1} parent=11 // pred_check
          %p248 = pneg %p177
        $region14: #{tpu_custom_call.1} parent=11 // pred_check_branch
          %250 = sbr.rel (%p248) target = $region16
        $region15: #{tpu_custom_call.1} parent=11 // pred_region
          %s251 = smul.u32 4, %s35
          %s253 = ssub.s32 1536, 1536
          %254 = vsyncadd [#allocation9], %s253
          %s255 = sadd.s32 %s34, %s251
          %s256 = smul.addr %s255, 128
          %s257 = scalar_lea.hbm %s3, %s256
          %s258 = sshll.u32 [#allocation8], 4
          %s259 = int_to_ptr.vmem [resolvable:$true] %s258
          %264 = dma.hbm_to_vmem [thread:$0]  %s257, 1536, %s259, [#allocation9], 128, 128, 8
        $region16: #{tpu_custom_call.1} parent=11 // pred_fallthru
          _
        // Predicated region
        $region17: #{tpu_custom_call.1} parent=11 // pred_check
          %p265 = pneg %p203
        $region18: #{tpu_custom_call.1} parent=11 // pred_check_branch
          %267 = sbr.rel (%p265) target = $region20
        $region19: #{tpu_custom_call.1} parent=11 // pred_region
          %p268 = scmp.lt.s32.totalorder %s34, 0
          %s269 = scalar_select %p268, %s34, 0
          %s270 = scalar_lea.vmem %s4, %s269
        $region20: #{tpu_custom_call.1} parent=11 // pred_fallthru
          _
      $region12: #{tpu_custom_call.1} parent=5 // pred_fallthru
        _
      %p271 = scmp.lt.s32.totalorder %s21, 2
      // Predicated region
      $region21: #{tpu_custom_call.1} parent=5 // pred_check
        %p272 = pneg %p271
      $region22: #{tpu_custom_call.1} parent=5 // pred_check_branch
        %274 = sbr.rel (%p272) target = $region24
      $region23: #{tpu_custom_call.1} parent=5 // pred_region
        // Predicated region
        $region25: #{tpu_custom_call.1} parent=23 // pred_check
          %p275 = pneg %p71
        $region26: #{tpu_custom_call.1} parent=23 // pred_check_branch
          %277 = sbr.rel (%p275) target = $region28
        $region27: #{tpu_custom_call.1} parent=23 // pred_region
          %s278 = sand.u32 %s61, 1
          %s279 = scalar_lea.sflag [#allocation3], %s278
          %s280 = sand.u32 %s61, 1
          %s281 = smul.addr %s280, 8
          %s282 = scalar_lea.vmem [#allocation2], %s281
          %s284 = ssub.s32 128, 128
          %285 = vsyncadd %s279, %s284
          %s286 = sadd.s32 %s31, %s29
          %s287 = sadd.s32 %s286, %s28
          %s288 = smul.addr %s287, 128
          %s289 = scalar_lea.hbm %s0, %s288
          %s291 = sshll.u32 %s282, 4
          %s292 = int_to_ptr.vmem [resolvable:$true] %s291
          %294 = dma.hbm_to_vmem [thread:$0]  %s289, 128, %s292, %s279
        $region28: #{tpu_custom_call.1} parent=23 // pred_fallthru
          _
        // Predicated region
        $region29: #{tpu_custom_call.1} parent=23 // pred_check
          %p295 = pneg %p107
        $region30: #{tpu_custom_call.1} parent=23 // pred_check_branch
          %297 = sbr.rel (%p295) target = $region32
        $region31: #{tpu_custom_call.1} parent=23 // pred_region
          %s298 = sand.u32 %s21, 1
          %s299 = scalar_lea.sflag [#allocation6], %s298
          %s300 = sand.u32 %s97, 1
          %s301 = smul.addr %s300, 8
          %s302 = scalar_lea.vmem [#allocation5], %s301
          %s303 = ssub.s32 %s29, 1
          %p304 = scmp.gt.s32.totalorder %s303, 0
          %s305 = scalar_select %p304, %s303, 0
          %s307 = ssub.s32 128, 128
          %308 = vsyncadd %s299, %s307
          %s309 = sadd.s32 %s31, %s305
          %s310 = sadd.s32 %s309, %s28
          %s311 = smul.addr %s310, 128
          %s312 = scalar_lea.hbm %s1, %s311
          %s314 = sshll.u32 %s302, 4
          %s315 = int_to_ptr.vmem [resolvable:$true] %s314
          %317 = dma.hbm_to_vmem [thread:$0]  %s312, 128, %s315, %s299
        $region32: #{tpu_custom_call.1} parent=23 // pred_fallthru
          _
        // Predicated region
        $region33: #{tpu_custom_call.1} parent=23 // pred_check
          %p318 = pneg %p143
        $region34: #{tpu_custom_call.1} parent=23 // pred_check_branch
          %320 = sbr.rel (%p318) target = $region36
        $region35: #{tpu_custom_call.1} parent=23 // pred_region
          %s321 = sand.u32 %s21, 1
          %s322 = scalar_lea.sflag [#allocation6], %s321
          %s323 = sand.u32 %s133, 1
          %s324 = smul.addr %s323, 8
          %s325 = scalar_lea.vmem [#allocation7], %s324
          %s326 = sadd.s32 %s29, 1
          %p327 = scmp.lt.s32.totalorder %s326, 0
          %s328 = scalar_select %p327, %s326, 0
          %s330 = ssub.s32 128, 128
          %331 = vsyncadd %s322, %s330
          %s332 = sadd.s32 %s31, %s328
          %s333 = sadd.s32 %s332, %s28
          %s334 = smul.addr %s333, 128
          %s335 = scalar_lea.hbm %s2, %s334
          %s337 = sshll.u32 %s325, 4
          %s338 = int_to_ptr.vmem [resolvable:$true] %s337
          %340 = dma.hbm_to_vmem [thread:$0]  %s335, 128, %s338, %s322
        $region36: #{tpu_custom_call.1} parent=23 // pred_fallthru
          _
      $region24: #{tpu_custom_call.1} parent=5 // pred_fallthru
        _
      %p341 = scmp.le.s32.totalorder 1, %s21
      %p342 = scmp.lt.s32.totalorder %s21, 3
      %p343 = pnand %p341, %p342
      %p344 = pneg %p343
      // Predicated region
      $region37: #{tpu_custom_call.1} parent=5 // pred_check
        _
      $region38: #{tpu_custom_call.1} parent=5 // pred_check_branch
        %346 = sbr.rel (%p343) target = $region40
      $region39: #{tpu_custom_call.1} parent=5 // pred_region
        %s347 = ssub.s32 %s21, 1
        %s348 = sand.u32 %s64, 1
        %s349 = scalar_lea.sflag [#allocation3], %s348
        %s350 = sand.u32 %s64, 1
        %s351 = smul.addr %s350, 8
        %s352 = scalar_lea.vmem [#allocation2], %s351
        // Predicated region
        $region41: #{tpu_custom_call.1} parent=39 // pred_check
          %p353 = pneg %p77
        $region42: #{tpu_custom_call.1} parent=39 // pred_check_branch
          %355 = sbr.rel (%p353) target = $region44
        $region43: #{tpu_custom_call.1} parent=39 // pred_region
          %356 = dma.done %s349, 128
        $region44: #{tpu_custom_call.1} parent=39 // pred_fallthru
          _
        %s357 = sand.u32 %s26, 1
        %s358 = scalar_lea.sflag [#allocation6], %s357
        %s359 = sand.u32 %s100, 1
        %s360 = smul.addr %s359, 8
        %s361 = scalar_lea.vmem [#allocation5], %s360
        // Predicated region
        $region45: #{tpu_custom_call.1} parent=39 // pred_check
          %p362 = pneg %p113
        $region46: #{tpu_custom_call.1} parent=39 // pred_check_branch
          %364 = sbr.rel (%p362) target = $region48
        $region47: #{tpu_custom_call.1} parent=39 // pred_region
          %365 = dma.done %s358, 128
        $region48: #{tpu_custom_call.1} parent=39 // pred_fallthru
          _
        %s366 = sand.u32 %s26, 1
        %s367 = scalar_lea.sflag [#allocation6], %s366
        %s368 = sand.u32 %s136, 1
        %s369 = smul.addr %s368, 8
        %s370 = scalar_lea.vmem [#allocation7], %s369
        // Predicated region
        $region49: #{tpu_custom_call.1} parent=39 // pred_check
          %p371 = pneg %p149
        $region50: #{tpu_custom_call.1} parent=39 // pred_check_branch
          %373 = sbr.rel (%p371) target = $region52
        $region51: #{tpu_custom_call.1} parent=39 // pred_region
          %374 = dma.done %s367, 128
        $region52: #{tpu_custom_call.1} parent=39 // pred_fallthru
          _
        // Predicated region
        $region53: #{tpu_custom_call.1} parent=39 // pred_check
          %p375 = pneg %p177
        $region54: #{tpu_custom_call.1} parent=39 // pred_check_branch
          %377 = sbr.rel (%p375) target = $region56
        $region55: #{tpu_custom_call.1} parent=39 // pred_region
          %378 = dma.done [#allocation9], 1536
        $region56: #{tpu_custom_call.1} parent=39 // pred_fallthru
          _
        %s379 = sand.u32 %s64, 1
        %s380 = scalar_lea.sflag [#allocation3], %s379
        %s381 = sand.u32 %s64, 1
        %s382 = smul.addr %s381, 8
        %s383 = scalar_lea.vmem [#allocation2], %s382
        %p384 = pneg %p77
        %p385 = pneg %p74
        %s386 = sand.u32 %s26, 1
        %s387 = scalar_lea.sflag [#allocation6], %s386
        %s388 = sand.u32 %s100, 1
        %s389 = smul.addr %s388, 8
        %s390 = scalar_lea.vmem [#allocation5], %s389
        %p391 = pneg %p113
        %p392 = pneg %p110
        %s393 = sand.u32 %s26, 1
        %s394 = scalar_lea.sflag [#allocation6], %s393
        %s395 = sand.u32 %s136, 1
        %s396 = smul.addr %s395, 8
        %s397 = scalar_lea.vmem [#allocation7], %s396
        %p398 = pneg %p149
        %p399 = pneg %p146
        %p400 = pneg %p177
        %p401 = pneg %p174
        %p402 = scmp.lt.s32.totalorder %s34, 0
        %s403 = scalar_select %p402, %s34, 0
        %s404 = scalar_lea.vmem %s4, %s403
        %p405 = pneg %p203
        %p406 = pneg %p200
        %p407 = pneg %p233
        %p408 = pneg %p230
        %s409 = sand.u32 %s220, 1
        %s410 = scalar_lea.sflag [#allocation4], %s409
        %s411 = sand.u32 %s220, 1
        %s412 = smul.addr %s411, 8
        %s413 = scalar_lea.vmem [#allocation10], %s412
        %s414 = ssub.s32 %s33, 1
        %p415 = scmp.gt.s32.totalorder %s414, 0
        %s416 = scalar_select %p415, %s414, 0
        %s417 = sadd.s32 %s33, 1
        %p418 = scmp.lt.s32.totalorder %s417, 0
        %s419 = scalar_select %p418, %s417, 0
        %s420 = smul.u32 4, %s35
        %p421 = scmp.lt.s32.totalorder %s34, 0
        %s422 = scalar_select %p421, %s34, 0
        %s423 = scalar_lea.vmem %s4, %s422
        %v424 = vld [vmem:[%s352] sm:$0xff]
        %v425 = vld [vmem:[%s361] sm:$0xff]
        %v426 = vld [vmem:[%s370] sm:$0xff]
        %p427 = scmp.eq.s32.totalorder %s33, 0
        %s428 = scalar_select %p427, 1, 0
        %v429 = vstv %s428
        %vm430 = vcmp.eq.s32.totalorder %v429, 1
        %v431 = vsel %vm430, 0.0, %v425
        %v432 = vsel %vm430, 0.0, %v426
        %v433 = vlaneseq
        %v434 = vshrl.u32 %v433, 7
        %vm435 = vcmp.eq.s32.totalorder %v434, 0
        %v436 = vrot.slane %v424, 7
        %v437 = vlaneseq
        %v438 = vshrl.u32 %v437, 7
        %v439 = vsub.s32 7, %v438
        %v440 = vrot.slane %v431, %v439
        %v441 = vsel %vm435, %v440, %v436
        %vm442 = vcmp.eq.s32.totalorder %v434, 7
        %v443 = vrot.slane %v424, 1
        %v444 = vlaneseq
        %v445 = vshrl.u32 %v444, 7
        %v446 = vsub.s32 0, %v445
        %v447 = vrot.slane %v432, %v446
        %v448 = vsel %vm442, %v447, %v443
        %v449 = vld [vmem:[#allocation8] sm:$0xff]
        %v450 = vld [vmem:[#allocation8 + $0x8] sm:$0xff]
        %v451 = vld [vmem:[#allocation8 + $0x10] sm:$0xff]
        %v452 = vld [vmem:[#allocation8 + $0x18] sm:$0xff]
        %s453 = scalar_lea.vmem [#allocation8], 32
        %v454 = vld [vmem:[%s453] sm:$0xff]
        %v455 = vld [vmem:[%s453 + $0x8] sm:$0xff]
        %v456 = vld [vmem:[%s453 + $0x10] sm:$0xff]
        %v457 = vld [vmem:[%s453 + $0x18] sm:$0xff]
        %vm458 = vcmask 261120
        %v460 = vsel %vm458, %v424, 0
        %462 = vmatprep.subr.mxu0 0.0
        %463 = vmatpush1.msra.mxu0 %v454
        %464 = vmatprep.subr.mxu0 0.0
        %465 = vmatpush1.msra.mxu0 %v455
        %466 = vmatprep.subr.mxu0 0.0
        %467 = vmatpush1.msra.mxu0 %v456
        %468 = vmatprep.subr.mxu0 0.0
        %469 = vmatpush1.msra.mxu0 %v457
        %470 = vmatprep.subr.mxu0 0.0
        %471 = vmatpush1.msra.mxu0 0.0
        %472 = vmatprep.subr.mxu0 0.0
        %473 = vmatpush1.msra.mxu0 0.0
        %474 = vmatprep.subr.mxu0 0.0
        %475 = vmatpush1.msra.mxu0 0.0
        %476 = vmatprep.subr.mxu0 0.0
        %477 = vmatpush1.msra.mxu0 0.0
        %478 = vmatprep.subr.mxu0 0.0
        %479 = vmatpush1.msra.mxu0 0.0
        %480 = vmatprep.subr.mxu0 0.0
        %481 = vmatpush1.msra.mxu0 0.0
        %482 = vmatprep.subr.mxu0 0.0
        %483 = vmatpush1.msra.mxu0 0.0
        %484 = vmatprep.subr.mxu0 0.0
        %485 = vmatpush1.msra.mxu0 0.0
        %486 = vmatprep.subr.mxu0 0.0
        %487 = vmatpush1.msra.mxu0 0.0
        %488 = vmatprep.subr.mxu0 0.0
        %489 = vmatpush1.msra.mxu0 0.0
        %490 = vmatprep.subr.mxu0 0.0
        %491 = vmatpush1.msra.mxu0 0.0
        %492 = vmatprep.subr.mxu0 0.0
        %493 = vmatpush1.msra.mxu0 0.0
        %494 = vmatprep.subr.mxu0 0.0
        %495 = vmatpush1.msra.mxu0 0.0
        %496 = vmatprep.subr.mxu0 0.0
        %497 = vmatpush1.msra.mxu0 0.0
        %498 = vmatprep.subr.mxu0 0.0
        %499 = vmatpush1.msra.mxu0 0.0
        %500 = vmatprep.subr.mxu0 0.0
        %501 = vmatpush1.msra.mxu0 0.0
        %502 = vmatprep.subr.mxu0 0.0
        %503 = vmatpush1.msra.mxu0 0.0
        %504 = vmatprep.subr.mxu0 0.0
        %505 = vmatpush1.msra.mxu0 0.0
        %506 = vmatprep.subr.mxu0 0.0
        %507 = vmatpush1.msra.mxu0 0.0
        %508 = vmatprep.subr.mxu0 0.0
        %509 = vmatpush1.msra.mxu0 0.0
        %510 = vmatprep.subr.mxu0 0.0
        %511 = vmatpush1.msra.mxu0 0.0
        %512 = vmatprep.subr.mxu0 0.0
        %513 = vmatpush1.msra.mxu0 0.0
        %514 = vmatprep.subr.mxu0 0.0
        %515 = vmatpush1.msra.mxu0 0.0
        %516 = vmatprep.subr.mxu0 0.0
        %517 = vmatpush1.msra.mxu0 0.0
        %518 = vmatprep.subr.mxu0 0.0
        %519 = vmatpush1.msra.mxu0 0.0
        %520 = vmatprep.subr.mxu0 0.0
        %521 = vmatpush1.msra.mxu0 0.0
        %522 = vmatprep.subr.mxu0 0.0
        %523 = vmatpush1.msra.mxu0 0.0
        %524 = vmatprep.subr.mxu0 0.0
        %525 = vmatpush1.msra.mxu0 0.0
        %526 = vmatprep.mubr.f32.mxu0 0.0
        %527 = vmatmul.mubr.f32.gmra.mrb[0].mxu0 %v460
        %v528 = vpop.f32.mrb[0].mxu0
        %v529 = vadd.f32 0.0, %v528
        %v530 = vpop.f32.mrb[0].mxu0
        %531 = vdwg.mxu0
        %v533 = vsel %vm458, %v441, 0
        %535 = vmatprep.subr.mxu0 0.0
        %536 = vmatpush1.msra.mxu0 %v449
        %537 = vmatprep.subr.mxu0 0.0
        %538 = vmatpush1.msra.mxu0 %v450
        %539 = vmatprep.subr.mxu0 0.0
        %540 = vmatpush1.msra.mxu0 %v451
        %541 = vmatprep.subr.mxu0 0.0
        %542 = vmatpush1.msra.mxu0 %v452
        %543 = vmatprep.subr.mxu0 0.0
        %544 = vmatpush1.msra.mxu0 0.0
        %545 = vmatprep.subr.mxu0 0.0
        %546 = vmatpush1.msra.mxu0 0.0
        %547 = vmatprep.subr.mxu0 0.0
        %548 = vmatpush1.msra.mxu0 0.0
        %549 = vmatprep.subr.mxu0 0.0
        %550 = vmatpush1.msra.mxu0 0.0
        %551 = vmatprep.subr.mxu0 0.0
        %552 = vmatpush1.msra.mxu0 0.0
        %553 = vmatprep.subr.mxu0 0.0
        %554 = vmatpush1.msra.mxu0 0.0
        %555 = vmatprep.subr.mxu0 0.0
        %556 = vmatpush1.msra.mxu0 0.0
        %557 = vmatprep.subr.mxu0 0.0
        %558 = vmatpush1.msra.mxu0 0.0
        %559 = vmatprep.subr.mxu0 0.0
        %560 = vmatpush1.msra.mxu0 0.0
        %561 = vmatprep.subr.mxu0 0.0
        %562 = vmatpush1.msra.mxu0 0.0
        %563 = vmatprep.subr.mxu0 0.0
        %564 = vmatpush1.msra.mxu0 0.0
        %565 = vmatprep.subr.mxu0 0.0
        %566 = vmatpush1.msra.mxu0 0.0
        %567 = vmatprep.subr.mxu0 0.0
        %568 = vmatpush1.msra.mxu0 0.0
        %569 = vmatprep.subr.mxu0 0.0
        %570 = vmatpush1.msra.mxu0 0.0
        %571 = vmatprep.subr.mxu0 0.0
        %572 = vmatpush1.msra.mxu0 0.0
        %573 = vmatprep.subr.mxu0 0.0
        %574 = vmatpush1.msra.mxu0 0.0
        %575 = vmatprep.subr.mxu0 0.0
        %576 = vmatpush1.msra.mxu0 0.0
        %577 = vmatprep.subr.mxu0 0.0
        %578 = vmatpush1.msra.mxu0 0.0
        %579 = vmatprep.subr.mxu0 0.0
        %580 = vmatpush1.msra.mxu0 0.0
        %581 = vmatprep.subr.mxu0 0.0
        %582 = vmatpush1.msra.mxu0 0.0
        %583 = vmatprep.subr.mxu0 0.0
        %584 = vmatpush1.msra.mxu0 0.0
        %585 = vmatprep.subr.mxu0 0.0
        %586 = vmatpush1.msra.mxu0 0.0
        %587 = vmatprep.subr.mxu0 0.0
        %588 = vmatpush1.msra.mxu0 0.0
        %589 = vmatprep.subr.mxu0 0.0
        %590 = vmatpush1.msra.mxu0 0.0
        %591 = vmatprep.subr.mxu0 0.0
        %592 = vmatpush1.msra.mxu0 0.0
        %593 = vmatprep.subr.mxu0 0.0
        %594 = vmatpush1.msra.mxu0 0.0
        %595 = vmatprep.subr.mxu0 0.0
        %596 = vmatpush1.msra.mxu0 0.0
        %597 = vmatprep.subr.mxu0 0.0
        %598 = vmatpush1.msra.mxu0 0.0
        %599 = vmatprep.mubr.f32.mxu0 0.0
        %600 = vmatmul.mubr.f32.gmra.mrb[0].mxu0 %v533
        %v601 = vpop.f32.mrb[0].mxu0
        %v602 = vadd.f32 %v529, %v601
        %v603 = vpop.f32.mrb[0].mxu0
        %604 = vdwg.mxu0
        %s605 = scalar_lea.vmem [#allocation8], 64
        %v606 = vld [vmem:[%s605] sm:$0xff]
        %v607 = vld [vmem:[%s605 + $0x8] sm:$0xff]
        %v608 = vld [vmem:[%s605 + $0x10] sm:$0xff]
        %v609 = vld [vmem:[%s605 + $0x18] sm:$0xff]
        %v611 = vsel %vm458, %v448, 0
        %613 = vmatprep.subr.mxu0 0.0
        %614 = vmatpush1.msra.mxu0 %v606
        %615 = vmatprep.subr.mxu0 0.0
        %616 = vmatpush1.msra.mxu0 %v607
        %617 = vmatprep.subr.mxu0 0.0
        %618 = vmatpush1.msra.mxu0 %v608
        %619 = vmatprep.subr.mxu0 0.0
        %620 = vmatpush1.msra.mxu0 %v609
        %621 = vmatprep.subr.mxu0 0.0
        %622 = vmatpush1.msra.mxu0 0.0
        %623 = vmatprep.subr.mxu0 0.0
        %624 = vmatpush1.msra.mxu0 0.0
        %625 = vmatprep.subr.mxu0 0.0
        %626 = vmatpush1.msra.mxu0 0.0
        %627 = vmatprep.subr.mxu0 0.0
        %628 = vmatpush1.msra.mxu0 0.0
        %629 = vmatprep.subr.mxu0 0.0
        %630 = vmatpush1.msra.mxu0 0.0
        %631 = vmatprep.subr.mxu0 0.0
        %632 = vmatpush1.msra.mxu0 0.0
        %633 = vmatprep.subr.mxu0 0.0
        %634 = vmatpush1.msra.mxu0 0.0
        %635 = vmatprep.subr.mxu0 0.0
        %636 = vmatpush1.msra.mxu0 0.0
        %637 = vmatprep.subr.mxu0 0.0
        %638 = vmatpush1.msra.mxu0 0.0
        %639 = vmatprep.subr.mxu0 0.0
        %640 = vmatpush1.msra.mxu0 0.0
        %641 = vmatprep.subr.mxu0 0.0
        %642 = vmatpush1.msra.mxu0 0.0
        %643 = vmatprep.subr.mxu0 0.0
        %644 = vmatpush1.msra.mxu0 0.0
        %645 = vmatprep.subr.mxu0 0.0
        %646 = vmatpush1.msra.mxu0 0.0
        %647 = vmatprep.subr.mxu0 0.0
        %648 = vmatpush1.msra.mxu0 0.0
        %649 = vmatprep.subr.mxu0 0.0
        %650 = vmatpush1.msra.mxu0 0.0
        %651 = vmatprep.subr.mxu0 0.0
        %652 = vmatpush1.msra.mxu0 0.0
        %653 = vmatprep.subr.mxu0 0.0
        %654 = vmatpush1.msra.mxu0 0.0
        %655 = vmatprep.subr.mxu0 0.0
        %656 = vmatpush1.msra.mxu0 0.0
        %657 = vmatprep.subr.mxu0 0.0
        %658 = vmatpush1.msra.mxu0 0.0
        %659 = vmatprep.subr.mxu0 0.0
        %660 = vmatpush1.msra.mxu0 0.0
        %661 = vmatprep.subr.mxu0 0.0
        %662 = vmatpush1.msra.mxu0 0.0
        %663 = vmatprep.subr.mxu0 0.0
        %664 = vmatpush1.msra.mxu0 0.0
        %665 = vmatprep.subr.mxu0 0.0
        %666 = vmatpush1.msra.mxu0 0.0
        %667 = vmatprep.subr.mxu0 0.0
        %668 = vmatpush1.msra.mxu0 0.0
        %669 = vmatprep.subr.mxu0 0.0
        %670 = vmatpush1.msra.mxu0 0.0
        %671 = vmatprep.subr.mxu0 0.0
        %672 = vmatpush1.msra.mxu0 0.0
        %673 = vmatprep.subr.mxu0 0.0
        %674 = vmatpush1.msra.mxu0 0.0
        %675 = vmatprep.subr.mxu0 0.0
        %676 = vmatpush1.msra.mxu0 0.0
        %677 = vmatprep.mubr.f32.mxu0 0.0
        %678 = vmatmul.mubr.f32.gmra.mrb[0].mxu0 %v611
        %v679 = vpop.f32.mrb[0].mxu0
        %v680 = vadd.f32 0.0, %v679
        %v681 = vpop.f32.mrb[0].mxu0
        %682 = vdwg.mxu0
        %v683 = vadd.f32 %v602, %v680
        %v684 = vld [vmem:[%s423] sm:$0x1]
        %v686 = vlaneseq
        %v687 = vshrl.u32 %v686, 7
        %v688 = vsub.s32 0, %v687
        %v689 = vrot.slane %v684, %v688
        %v691 = vadd.f32 %v683, %v689
        %vm692 = vcmask 523264
        %693 = vst.msk [vmem:[%s413] sm:$0xff] %vm692, %v691
        %s694 = sand.u32 %s220, 1
        %s695 = scalar_lea.sflag [#allocation4], %s694
        %s696 = sand.u32 %s220, 1
        %s697 = smul.addr %s696, 8
        %s698 = scalar_lea.vmem [#allocation10], %s697
        // Predicated region
        $region57: #{tpu_custom_call.1} parent=39 // pred_check
          %p699 = pneg %p230
        $region58: #{tpu_custom_call.1} parent=39 // pred_check_branch
          %701 = sbr.rel (%p699) target = $region60
        $region59: #{tpu_custom_call.1} parent=39 // pred_region
          %s703 = ssub.s32 128, 128
          %704 = vsyncadd %s695, %s703
          %s705 = sadd.s32 %s34, %s33
          %s706 = sadd.s32 %s705, %s32
          %s707 = smul.addr %s706, 128
          %s708 = scalar_lea.hbm %s5, %s707
          %s710 = sshll.u32 %s698, 4
          %s711 = int_to_ptr.vmem [resolvable:$true] %s710
          %713 = dma.vmem_to_hbm [thread:$0]  %s711, 128, %s708, %s695
        $region60: #{tpu_custom_call.1} parent=39 // pred_fallthru
          _
      $region40: #{tpu_custom_call.1} parent=5 // pred_fallthru
        _
      %p714 = scmp.le.s32.totalorder 2, %s21
      // Predicated region
      $region61: #{tpu_custom_call.1} parent=5 // pred_check
        %p715 = pneg %p714
      $region62: #{tpu_custom_call.1} parent=5 // pred_check_branch
        %717 = sbr.rel (%p715) target = $region64
      $region63: #{tpu_custom_call.1} parent=5 // pred_region
        %s718 = ssub.s32 %s21, 2
        // Predicated region
        $region65: #{tpu_custom_call.1} parent=63 // pred_check
          %p719 = pneg %p236
        $region66: #{tpu_custom_call.1} parent=63 // pred_check_branch
          %721 = sbr.rel (%p719) target = $region68
        $region67: #{tpu_custom_call.1} parent=63 // pred_region
          %s722 = sand.u32 %s221, 1
          %s723 = scalar_lea.sflag [#allocation4], %s722
          %s724 = sand.u32 %s221, 1
          %s725 = smul.addr %s724, 8
          %s726 = scalar_lea.vmem [#allocation10], %s725
          %727 = dma.done %s723, 128
        $region68: #{tpu_custom_call.1} parent=63 // pred_fallthru
          _
      $region64: #{tpu_custom_call.1} parent=5 // pred_fallthru
        _
    $region6: #{tpu_custom_call.1} parent=1 // loop_footer
      %s25 = sadd.s32 1, %s21
    $region7: #{tpu_custom_call.1} parent=1 // loop_footer_branch
      %20 = sbr.rel target = $region3
    $region8: #{tpu_custom_call.1} parent=1 // loop_exit
      _
    %728 = vsyncpa [#allocation3], 1
    %s729 = scalar_lea.sflag [#allocation3], 1
    %730 = vsyncpa %s729, 1
    %731 = vsyncpa [#allocation6], 1
    %s732 = scalar_lea.sflag [#allocation6], 1
    %733 = vsyncpa %s732, 1
    %734 = vsyncpa [#allocation9], 1
    %735 = vsyncpa [#allocation4], 1
    %s736 = scalar_lea.sflag [#allocation4], 1
    %737 = vsyncpa %s736, 1

</llo_original>
